<compile_context>
chip_gen: v6e
topology: v6e:2x2x1
jax: 0.10.0
libtpu: 0.0.40
codegen_flags: <defaults>
</compile_context>

<pallas_src>
import jax
import jax.numpy as jnp
from jax.experimental import pallas as pl
from jax.experimental.pallas import tpu as pltpu

LANES = 128
MAX_TILE_ROWS = 1024   # (1024, 128) f32 block = 512 KiB per input per buffer
ROW_ALIGN = 16         # multiple of 8 (f32 tiling) and 16 (bf16 packing)
NUM_CHUNKS = 2         # leading "parallel" grid axis (uses both TCs on v7x)


def _round_up(a, m):
    return (a + m - 1) // m * m


def _dice_bce_kernel(x_ref, t_ref, part_ref, acc_pt, acc_den, acc_bce):
    s = pl.program_id(1)

    @pl.when(s == 0)
    def _init():
        acc_pt[...] = jnp.zeros_like(acc_pt)
        acc_den[...] = jnp.zeros_like(acc_den)
        acc_bce[...] = jnp.zeros_like(acc_bce)

    x = x_ref[...].astype(jnp.float32)   # (tile_rows, LANES) logits
    t = t_ref[...].astype(jnp.float32)   # (tile_rows, LANES) targets

    # One exp per element, shared between sigmoid and BCE.
    e = jnp.exp(-jnp.abs(x))                       # EUP
    r = 1.0 / (1.0 + e)                            # full-precision reciprocal
    p = jnp.where(x >= 0, r, e * r)                # sigmoid(x), stable
    # Stable BCE-with-logits: max(x,0) - x*t + log(1 + exp(-|x|)).
    # (Exact value of -[t*log p + (1-t)*log(1-p)]; no clamps needed.)
    bce = jnp.maximum(x, 0.0) - x * t + jnp.log(1.0 + e)

    def fold(v):
        # (tile_rows, LANES) -> (8, LANES): sums over the leading (vreg) axis,
        # i.e. pure VPU adds; the expensive XLU reduce is deferred to the wrapper.
        return jnp.sum(v.reshape(-1, 8, LANES), axis=0)

    acc_pt[...] += fold(p * t)
    acc_den[...] += fold(p + t)
    acc_bce[...] += fold(bce)

    @pl.when(s == pl.num_programs(1) - 1)
    def _write_out():
        part_ref[0, 0:8, :] = acc_pt[...]
        part_ref[0, 8:16, :] = acc_den[...]
        part_ref[0, 16:24, :] = acc_bce[...]


def dice_bce_loss(logits, targets, smooth=1.0):
    """Equivalent of DiceBCELoss.forward(logits, targets, torch.sigmoid, smooth)."""
    n = int(logits.size)
    assert int(targets.size) == n

    x = jnp.ravel(logits)          # keep native dtype; cast inside the kernel
    t = jnp.ravel(targets)

    rows = pl.cdiv(n, LANES)
    tile_rows = min(MAX_TILE_ROWS,
                    _round_up(max(pl.cdiv(rows, NUM_CHUNKS), 1), ROW_ALIGN))
    steps = pl.cdiv(rows, NUM_CHUNKS * tile_rows)
    rows_padded = NUM_CHUNKS * steps * tile_rows
    pad = rows_padded * LANES - n
    if pad:
        # Pad logits very negative / targets zero so sigmoid(p)=0, p*t=0, bce=0
        # for pad elements -> no per-element mask in the hot loop.
        x = jnp.pad(x, (0, pad), constant_values=-1e4)
        t = jnp.pad(t, (0, pad), constant_values=0)
    x = x.reshape(rows_padded, LANES)
    t = t.reshape(rows_padded, LANES)

    parts = pl.pallas_call(
        _dice_bce_kernel,
        out_shape=jax.ShapeDtypeStruct((NUM_CHUNKS, 3 * 8, LANES), jnp.float32),
        grid_spec=pltpu.PrefetchScalarGridSpec(
            num_scalar_prefetch=0,
            grid=(NUM_CHUNKS, steps),
            in_specs=[
                pl.BlockSpec((tile_rows, LANES), lambda p, s: (p * steps + s, 0)),
                pl.BlockSpec((tile_rows, LANES), lambda p, s: (p * steps + s, 0)),
            ],
            out_specs=pl.BlockSpec((1, 3 * 8, LANES), lambda p, s: (p, 0, 0)),
            scratch_shapes=[pltpu.VMEM((8, LANES), jnp.float32)] * 3,
        ),
        compiler_params=pltpu.CompilerParams(
            dimension_semantics=("parallel", "arbitrary")),
    )(x, t)

    # Tiny final reduction + scalar math in plain JAX (keeps the kernel free of
    # baked-in n/smooth constants and of per-step XLU reductions).
    sum_pt = jnp.sum(parts[:, 0:8, :])
    sum_den = jnp.sum(parts[:, 8:16, :])
    sum_bce = jnp.sum(parts[:, 16:24, :])
    smooth = jnp.float32(smooth)
    dice_loss = 1.0 - (2.0 * sum_pt + smooth) / (sum_den + smooth)
    bce_mean = sum_bce / jnp.float32(n)
    return bce_mean + dice_loss


def _reference(logits, targets, smooth=1.0):
    p = jax.nn.sigmoid(logits.astype(jnp.float32)).ravel()
    t = targets.astype(jnp.float32).ravel()
    inter = jnp.sum(p * t)
    dice = 1.0 - (2.0 * inter + smooth) / (jnp.sum(p) + jnp.sum(t) + smooth)
    bce = jnp.mean(-(t * jnp.log(p) + (1.0 - t) * jnp.log(1.0 - p)))
    return bce + dice


if __name__ == "__main__":
    key = jax.random.PRNGKey(0)
    k1, k2 = jax.random.split(key)
    # NCHW logits, binary targets
    x = jax.random.normal(k1, (2, 4, 16, 16), dtype=jnp.float32)
    t = (jax.random.uniform(k2, (2, 4, 16, 16)) > 0.5).astype(jnp.float32)

    loss = jax.block_until_ready(dice_bce_loss(x, t, smooth=1.0))
    ref = jax.block_until_ready(_reference(x, t, smooth=1.0))
    assert jnp.allclose(loss, ref, rtol=1e-5, atol=1e-5), (loss, ref)
    print("KERNEL_OK")
</pallas_src>

<mosaic_0001>
module attributes {stable_mosaic.version = 11 : i64} {
  func.func @_dice_bce_kernel(%arg0: i32, %arg1: i32, %arg2: memref<16x128xf32, #tpu.memory_space<vmem>>, %arg3: memref<16x128xf32, #tpu.memory_space<vmem>>, %arg4: memref<1x24x128xf32, #tpu.memory_space<vmem>>, %arg5: memref<8x128xf32, #tpu.memory_space<vmem>>, %arg6: memref<8x128xf32, #tpu.memory_space<vmem>>, %arg7: memref<8x128xf32, #tpu.memory_space<vmem>>) attributes {dimension_semantics = [#tpu.dimension_semantics<parallel>, #tpu.dimension_semantics<arbitrary>], iteration_bounds = array<i64: 2, 1>, scalar_prefetch = 0 : i64, scratch_operands = 3 : i64, tpu.core_type = #tpu.core_type<tc>, window_params = [{transform_indices = @transform_0, window_bounds = array<i64: 16, 128>}, {transform_indices = @transform_1, window_bounds = array<i64: 16, 128>}, {transform_indices = @transform_2, window_bounds = array<i64: 1, 24, 128>}]} {
    %c0_i32 = arith.constant 0 : i32
    %0 = arith.cmpi eq, %arg1, %c0_i32 : i32
    %1 = arith.extui %0 : i1 to i32
    %c0_i32_0 = arith.constant 0 : i32
    %2 = arith.cmpi ne, %1, %c0_i32_0 : i32
    scf.if %2 {
      %cst_26 = arith.constant 0.000000e+00 : f32
      %45 = vector.broadcast %cst_26 : f32 to vector<8x128xf32>
      %c0_27 = arith.constant 0 : index
      %c0_28 = arith.constant 0 : index
      %46 = vector.load %arg5[%c0_27, %c0_28] : memref<8x128xf32, #tpu.memory_space<vmem>>, vector<8x128xf32>
      tpu.vector_store %arg5[%c0_27, %c0_28], %45 {strides = array<i32>} : memref<8x128xf32, #tpu.memory_space<vmem>>, vector<8x128xf32>,
      %cst_29 = arith.constant 0.000000e+00 : f32
      %47 = vector.broadcast %cst_29 : f32 to vector<8x128xf32>
      %c0_30 = arith.constant 0 : index
      %c0_31 = arith.constant 0 : index
      %48 = vector.load %arg6[%c0_30, %c0_31] : memref<8x128xf32, #tpu.memory_space<vmem>>, vector<8x128xf32>
      tpu.vector_store %arg6[%c0_30, %c0_31], %47 {strides = array<i32>} : memref<8x128xf32, #tpu.memory_space<vmem>>, vector<8x128xf32>,
      %cst_32 = arith.constant 0.000000e+00 : f32
      %49 = vector.broadcast %cst_32 : f32 to vector<8x128xf32>
      %c0_33 = arith.constant 0 : index
      %c0_34 = arith.constant 0 : index
      %50 = vector.load %arg7[%c0_33, %c0_34] : memref<8x128xf32, #tpu.memory_space<vmem>>, vector<8x128xf32>
      tpu.vector_store %arg7[%c0_33, %c0_34], %49 {strides = array<i32>} : memref<8x128xf32, #tpu.memory_space<vmem>>, vector<8x128xf32>,
    } else {
    }
    %c0 = arith.constant 0 : index
    %c0_1 = arith.constant 0 : index
    %3 = vector.load %arg2[%c0, %c0_1] : memref<16x128xf32, #tpu.memory_space<vmem>>, vector<16x128xf32>
    %c0_2 = arith.constant 0 : index
    %c0_3 = arith.constant 0 : index
    %4 = vector.load %arg3[%c0_2, %c0_3] : memref<16x128xf32, #tpu.memory_space<vmem>>, vector<16x128xf32>
    %5 = math.absf %3 : vector<16x128xf32>
    %cst = arith.constant 0.000000e+00 : f32
    %6 = vector.broadcast %cst : f32 to vector<16x128xf32>
    %7 = arith.subf %6, %5 : vector<16x128xf32>
    %8 = math.exp %7 : vector<16x128xf32>
    %cst_4 = arith.constant 1.000000e+00 : f32
    %9 = vector.broadcast %cst_4 : f32 to vector<16x128xf32>
    %10 = arith.addf %9, %8 : vector<16x128xf32>
    %cst_5 = arith.constant 1.000000e+00 : f32
    %11 = vector.broadcast %cst_5 : f32 to vector<16x128xf32>
    %12 = arith.divf %11, %10 : vector<16x128xf32>
    %cst_6 = arith.constant 0.000000e+00 : f32
    %13 = vector.broadcast %cst_6 : f32 to vector<16x128xf32>
    %14 = arith.cmpf oge, %3, %13 : vector<16x128xf32>
    %15 = arith.mulf %8, %12 : vector<16x128xf32>
    %16 = arith.select %14, %12, %15 : vector<16x128xi1>, vector<16x128xf32>
    %cst_7 = arith.constant 0.000000e+00 : f32
    %17 = vector.broadcast %cst_7 : f32 to vector<16x128xf32>
    %18 = arith.maximumf %3, %17 : vector<16x128xf32>
    %19 = arith.mulf %3, %4 : vector<16x128xf32>
    %20 = arith.subf %18, %19 : vector<16x128xf32>
    %cst_8 = arith.constant 1.000000e+00 : f32
    %21 = vector.broadcast %cst_8 : f32 to vector<16x128xf32>
    %22 = arith.addf %21, %8 : vector<16x128xf32>
    %23 = math.log %22 : vector<16x128xf32>
    %24 = arith.addf %20, %23 : vector<16x128xf32>
    %c0_9 = arith.constant 0 : index
    %c0_10 = arith.constant 0 : index
    %25 = vector.load %arg5[%c0_9, %c0_10] : memref<8x128xf32, #tpu.memory_space<vmem>>, vector<8x128xf32>
    %26 = arith.mulf %16, %4 : vector<16x128xf32>
    %27 = vector.shape_cast %26 : vector<16x128xf32> to vector<2x8x128xf32>
    %cst_11 = arith.constant dense<0.000000e+00> : vector<8x128xf32>
    %28 = vector.multi_reduction <add>, %27, %cst_11 [0] : vector<2x8x128xf32> to vector<8x128xf32>
    %29 = arith.addf %25, %28 : vector<8x128xf32>
    %c0_12 = arith.constant 0 : index
    %c0_13 = arith.constant 0 : index
    %30 = vector.load %arg5[%c0_12, %c0_13] : memref<8x128xf32, #tpu.memory_space<vmem>>, vector<8x128xf32>
    tpu.vector_store %arg5[%c0_12, %c0_13], %29 {strides = array<i32>} : memref<8x128xf32, #tpu.memory_space<vmem>>, vector<8x128xf32>,
    %c0_14 = arith.constant 0 : index
    %c0_15 = arith.constant 0 : index
    %31 = vector.load %arg6[%c0_14, %c0_15] : memref<8x128xf32, #tpu.memory_space<vmem>>, vector<8x128xf32>
    %32 = arith.addf %16, %4 : vector<16x128xf32>
    %33 = vector.shape_cast %32 : vector<16x128xf32> to vector<2x8x128xf32>
    %cst_16 = arith.constant dense<0.000000e+00> : vector<8x128xf32>
    %34 = vector.multi_reduction <add>, %33, %cst_16 [0] : vector<2x8x128xf32> to vector<8x128xf32>
    %35 = arith.addf %31, %34 : vector<8x128xf32>
    %c0_17 = arith.constant 0 : index
    %c0_18 = arith.constant 0 : index
    %36 = vector.load %arg6[%c0_17, %c0_18] : memref<8x128xf32, #tpu.memory_space<vmem>>, vector<8x128xf32>
    tpu.vector_store %arg6[%c0_17, %c0_18], %35 {strides = array<i32>} : memref<8x128xf32, #tpu.memory_space<vmem>>, vector<8x128xf32>,
    %c0_19 = arith.constant 0 : index
    %c0_20 = arith.constant 0 : index
    %37 = vector.load %arg7[%c0_19, %c0_20] : memref<8x128xf32, #tpu.memory_space<vmem>>, vector<8x128xf32>
    %38 = vector.shape_cast %24 : vector<16x128xf32> to vector<2x8x128xf32>
    %cst_21 = arith.constant dense<0.000000e+00> : vector<8x128xf32>
    %39 = vector.multi_reduction <add>, %38, %cst_21 [0] : vector<2x8x128xf32> to vector<8x128xf32>
    %40 = arith.addf %37, %39 : vector<8x128xf32>
    %c0_22 = arith.constant 0 : index
    %c0_23 = arith.constant 0 : index
    %41 = vector.load %arg7[%c0_22, %c0_23] : memref<8x128xf32, #tpu.memory_space<vmem>>, vector<8x128xf32>
    tpu.vector_store %arg7[%c0_22, %c0_23], %40 {strides = array<i32>} : memref<8x128xf32, #tpu.memory_space<vmem>>, vector<8x128xf32>,
    %c0_i32_24 = arith.constant 0 : i32
    %42 = arith.cmpi eq, %arg1, %c0_i32_24 : i32
    %43 = arith.extui %42 : i1 to i32
    %c0_i32_25 = arith.constant 0 : i32
    %44 = arith.cmpi ne, %43, %c0_i32_25 : i32
    scf.if %44 {
      %c0_26 = arith.constant 0 : index
      %c0_27 = arith.constant 0 : index
      %45 = vector.load %arg5[%c0_26, %c0_27] : memref<8x128xf32, #tpu.memory_space<vmem>>, vector<8x128xf32>
      %c0_28 = arith.constant 0 : index
      %c0_29 = arith.constant 0 : index
      %c0_30 = arith.constant 0 : index
      %46 = vector.load %arg4[%c0_28, %c0_29, %c0_30] : memref<1x24x128xf32, #tpu.memory_space<vmem>>, vector<1x8x128xf32>
      %47 = vector.shape_cast %46 : vector<1x8x128xf32> to vector<8x128xf32>
      %48 = vector.shape_cast %45 : vector<8x128xf32> to vector<1x8x128xf32>
      tpu.vector_store %arg4[%c0_28, %c0_29, %c0_30], %48 {strides = array<i32>} : memref<1x24x128xf32, #tpu.memory_space<vmem>>, vector<1x8x128xf32>,
      %c0_31 = arith.constant 0 : index
      %c0_32 = arith.constant 0 : index
      %49 = vector.load %arg6[%c0_31, %c0_32] : memref<8x128xf32, #tpu.memory_space<vmem>>, vector<8x128xf32>
      %c0_33 = arith.constant 0 : index
      %c8 = arith.constant 8 : index
      %c0_34 = arith.constant 0 : index
      %50 = vector.load %arg4[%c0_33, %c8, %c0_34] : memref<1x24x128xf32, #tpu.memory_space<vmem>>, vector<1x8x128xf32>
      %51 = vector.shape_cast %50 : vector<1x8x128xf32> to vector<8x128xf32>
      %52 = vector.shape_cast %49 : vector<8x128xf32> to vector<1x8x128xf32>
      tpu.vector_store %arg4[%c0_33, %c8, %c0_34], %52 {strides = array<i32>} : memref<1x24x128xf32, #tpu.memory_space<vmem>>, vector<1x8x128xf32>,
      %c0_35 = arith.constant 0 : index
      %c0_36 = arith.constant 0 : index
      %53 = vector.load %arg7[%c0_35, %c0_36] : memref<8x128xf32, #tpu.memory_space<vmem>>, vector<8x128xf32>
      %c0_37 = arith.constant 0 : index
      %c16 = arith.constant 16 : index
      %c0_38 = arith.constant 0 : index
      %54 = vector.load %arg4[%c0_37, %c16, %c0_38] : memref<1x24x128xf32, #tpu.memory_space<vmem>>, vector<1x8x128xf32>
      %55 = vector.shape_cast %54 : vector<1x8x128xf32> to vector<8x128xf32>
      %56 = vector.shape_cast %53 : vector<8x128xf32> to vector<1x8x128xf32>
      tpu.vector_store %arg4[%c0_37, %c16, %c0_38], %56 {strides = array<i32>} : memref<1x24x128xf32, #tpu.memory_space<vmem>>, vector<1x8x128xf32>,
    } else {
    }
    return
  }
  func.func @transform_0(%arg0: i32, %arg1: i32) -> (i32, i32) {
    %c1_i32 = arith.constant 1 : i32
    %0 = arith.muli %arg0, %c1_i32 : i32
    %1 = arith.addi %0, %arg1 : i32
    %c0_i32 = arith.constant 0 : i32
    %c0_i32_0 = arith.constant 0 : i32
    return %1, %c0_i32 : i32, i32
  }
  func.func @transform_1(%arg0: i32, %arg1: i32) -> (i32, i32) {
    %c1_i32 = arith.constant 1 : i32
    %0 = arith.muli %arg0, %c1_i32 : i32
    %1 = arith.addi %0, %arg1 : i32
    %c0_i32 = arith.constant 0 : i32
    %c0_i32_0 = arith.constant 0 : i32
    return %1, %c0_i32 : i32, i32
  }
  func.func @transform_2(%arg0: i32, %arg1: i32) -> (i32, i32, i32) {
    %c0_i32 = arith.constant 0 : i32
    %c0_i32_0 = arith.constant 0 : i32
    %c0_i32_1 = arith.constant 0 : i32
    return %arg0, %c0_i32, %c0_i32_0 : i32, i32, i32
  }
}

</mosaic_0001>

<llo_original>
// kernel: tpu_custom_call.1
$region0: #{tpu_custom_call.1}
  #allocation0 [shape = 'u32[]', space=smem, size = 0x4, offset = 0x4, fixed_abs, tag = 'smem constant byte address 0x4 - core index']
  #allocation1 [shape = 'u32[144,128]{1,0:T(1,128)}', space=vmem, size = 0x12000, scoped, tag = 'internal scratch']
  #allocation2 [shape = 'f32[8,128]{1,0:T(8,128)}', space=vmem, size = 0x1000, scoped, tag = 'scratch operand']
  #allocation3 [shape = 'f32[8,128]{1,0:T(8,128)}', space=vmem, size = 0x1000, scoped, tag = 'scratch operand']
  #allocation4 [shape = 'f32[8,128]{1,0:T(8,128)}', space=vmem, size = 0x1000, scoped, tag = 'scratch operand']
  %s0 = inlined_call_operand.hbm [shape: f32[32,128], index: 0, kind: input, shape index: {}]
  %s1 = inlined_call_operand.hbm [shape: f32[32,128], index: 1, kind: input, shape index: {}]
  %s2 = inlined_call_operand.hbm [shape: f32[2,24,128], index: 2, kind: output, shape index: {}]
  %s3 = sld [smem:[#allocation0]]
  $region57: #{tpu_custom_call.1} parent=0
    _
  %s5 = ssub.s32 1, %s3
  %s6 = scalar_select 0, %s5, %s3
  $region1: #{tpu_custom_call.1} parent=0
    #allocation5 [shape = 'u8[16384]{0}', space=vmem, size = 0x4000, scoped, tag = 'input window, operand 0']
    #allocation6 [shape = 's32[2]{0}', space=sflag, size = 0x8, scoped, tag = 'scoped memory for tpu_custom_call.1']
    #allocation7 [shape = 's32[2]{0}', space=sflag, size = 0x8, scoped, tag = 'scoped memory for tpu_custom_call.1']
    #allocation8 [shape = 'u8[16384]{0}', space=vmem, size = 0x4000, scoped, tag = 'input window, operand 1']
    #allocation9 [shape = 's32[2]{0}', space=sflag, size = 0x8, scoped, tag = 'scoped memory for tpu_custom_call.1']
    #allocation10 [shape = 'u8[24576]{0}', space=vmem, size = 0x6000, scoped, tag = 'output window, operand 0']
    %7 = vsyncpa [#allocation6], 0
    %s8 = scalar_lea.sflag [#allocation6], 1
    %9 = vsyncpa %s8, 0
    %10 = vsyncpa [#allocation9], 0
    %s11 = scalar_lea.sflag [#allocation9], 1
    %12 = vsyncpa %s11, 0
    %13 = vsyncpa [#allocation7], 0
    %s14 = scalar_lea.sflag [#allocation7], 1
    %15 = vsyncpa %s14, 0
    loop: start=0, step=1, limit=4
    $region2: #{tpu_custom_call.1} parent=1 // loop_pre_header
      _
    $region3: #{tpu_custom_call.1} parent=1 // loop_header
      %s17 = sphi 0, %s21
      %p18 = scmp.ge.s32.totalorder %s17, 4
      %s24 = sphi 0, %s36
      %s25 = sphi 0, %s32
      %s26 = sphi 0, %s24
      %s27 = sphi 0, %s25
      %s28 = sphi 0, %s26
      %s29 = sphi 0, %s27
      %s41 = sphi 0, %s43
      %s44 = sphi 0, %s41
      %s45 = sphi 0, %s44
      %s61 = sphi 0, %s45
      %s69 = sphi 0, %s71
      %s72 = sphi 0, %s69
      %s73 = sphi 0, %s72
      %s89 = sphi 0, %s73
      %s95 = sphi 0, %s97
      %s98 = sphi 0, %s95
      %s99 = sphi 0, %s98
      %s115 = sphi 0, %s99
    $region4: #{tpu_custom_call.1} parent=1 // loop_header_branch
      %20 = sbr.rel (%p18) target = $region8
    $region5: #{tpu_custom_call.1} parent=1 // loop_body
      %s22 = ssub.s32 %s17, 1
      %s23 = ssub.s32 %s17, 2
      %s30 = sadd.s32 1, %s25
      %p31 = scmp.ge.s32.totalorder %s30, 1
      %s32 = scalar_select %p31, 0, %s30
      %s33 = sadd.s32 1, %s24
      %s34 = scalar_select %p31, %s33, %s24
      %p35 = scmp.ge.s32.totalorder %s34, 2
      %s36 = scalar_select %p35, 0, %s34
      %s37 = sadd.s32 %s24, %s25
      %s38 = sadd.s32 %s36, %s32
      %s39 = ssub.s32 %s37, %s38
      %p40 = scmp.eq.s32.totalorder %s39, 0
      %s42 = sadd.s32 %s41, 1
      %s43 = scalar_select %p40, %s41, %s42
      %p46 = pneg %p40
      %p47 = scmp.eq.s32.totalorder %s17, 1
      %p48 = por %p46, %p47
      %p49 = scmp.ne.s32.totalorder %s41, %s44
      %p50 = scmp.eq.s32.totalorder %s17, 0
      %p51 = por %p49, %p50
      %p52 = scmp.ne.s32.totalorder %s41, %s44
      %p53 = scmp.eq.s32.totalorder %s22, 1
      %p54 = por %p52, %p53
      %p55 = scmp.ne.s32.totalorder %s44, %s45
      %p56 = scmp.eq.s32.totalorder %s22, 0
      %p57 = por %p55, %p56
      %p58 = scmp.ne.s32.totalorder %s44, %s45
      %p59 = scmp.eq.s32.totalorder %s23, 1
      %p60 = por %p58, %p59
      %p62 = scmp.ne.s32.totalorder %s45, %s61
      %p63 = scmp.eq.s32.totalorder %s23, 0
      %p64 = por %p62, %p63
      %s65 = sadd.s32 %s24, %s25
      %s66 = sadd.s32 %s36, %s32
      %s67 = ssub.s32 %s65, %s66
      %p68 = scmp.eq.s32.totalorder %s67, 0
      %s70 = sadd.s32 %s69, 1
      %s71 = scalar_select %p68, %s69, %s70
      %p74 = pneg %p68
      %p75 = scmp.eq.s32.totalorder %s17, 1
      %p76 = por %p74, %p75
      %p77 = scmp.ne.s32.totalorder %s69, %s72
      %p78 = scmp.eq.s32.totalorder %s17, 0
      %p79 = por %p77, %p78
      %p80 = scmp.ne.s32.totalorder %s69, %s72
      %p81 = scmp.eq.s32.totalorder %s22, 1
      %p82 = por %p80, %p81
      %p83 = scmp.ne.s32.totalorder %s72, %s73
      %p84 = scmp.eq.s32.totalorder %s22, 0
      %p85 = por %p83, %p84
      %p86 = scmp.ne.s32.totalorder %s72, %s73
      %p87 = scmp.eq.s32.totalorder %s23, 1
      %p88 = por %p86, %p87
      %p90 = scmp.ne.s32.totalorder %s73, %s89
      %p91 = scmp.eq.s32.totalorder %s23, 0
      %p92 = por %p90, %p91
      %s93 = ssub.s32 %s24, %s36
      %p94 = scmp.eq.s32.totalorder %s93, 0
      %s96 = sadd.s32 %s95, 1
      %s97 = scalar_select %p94, %s95, %s96
      %p100 = pneg %p94
      %p101 = scmp.eq.s32.totalorder %s17, 1
      %p102 = por %p100, %p101
      %p103 = scmp.ne.s32.totalorder %s95, %s98
      %p104 = scmp.eq.s32.totalorder %s17, 0
      %p105 = por %p103, %p104
      %p106 = scmp.ne.s32.totalorder %s95, %s98
      %p107 = scmp.eq.s32.totalorder %s22, 1
      %p108 = por %p106, %p107
      %p109 = scmp.ne.s32.totalorder %s98, %s99
      %p110 = scmp.eq.s32.totalorder %s22, 0
      %p111 = por %p109, %p110
      %p112 = scmp.ne.s32.totalorder %s98, %s99
      %p113 = scmp.eq.s32.totalorder %s23, 1
      %p114 = por %p112, %p113
      %p116 = scmp.ne.s32.totalorder %s99, %s115
      %p117 = scmp.eq.s32.totalorder %s23, 0
      %p118 = por %p116, %p117
      %p119 = scmp.le.s32.totalorder 1, %s17
      %p120 = scmp.lt.s32.totalorder %s17, 3
      %p121 = pnand %p119, %p120
      %p122 = pneg %p121
      // Predicated region
      $region9: #{tpu_custom_call.1} parent=5 // pred_check
        _
      $region10: #{tpu_custom_call.1} parent=5 // pred_check_branch
        %124 = sbr.rel (%p121) target = $region12
      $region11: #{tpu_custom_call.1} parent=5 // pred_region
        %s125 = ssub.s32 %s17, 1
      $region12: #{tpu_custom_call.1} parent=5 // pred_fallthru
        _
      %p126 = scmp.lt.s32.totalorder %s17, 2
      // Predicated region
      $region13: #{tpu_custom_call.1} parent=5 // pred_check
        %p127 = pneg %p126
      $region14: #{tpu_custom_call.1} parent=5 // pred_check_branch
        %129 = sbr.rel (%p127) target = $region16
      $region15: #{tpu_custom_call.1} parent=5 // pred_region
        // Predicated region
        $region17: #{tpu_custom_call.1} parent=15 // pred_check
          %p130 = pneg %p51
        $region18: #{tpu_custom_call.1} parent=15 // pred_check_branch
          %132 = sbr.rel (%p130) target = $region20
        $region19: #{tpu_custom_call.1} parent=15 // pred_region
          %s133 = sand.u32 %s41, 1
          %s134 = scalar_lea.sflag [#allocation6], %s133
          %s135 = sand.u32 %s41, 1
          %s136 = smul.addr %s135, 16
          %s137 = scalar_lea.vmem [#allocation5], %s136
          %s138 = sadd.s32 %s24, %s25
          %s139 = smul.u32 2, %s138
          %s141 = ssub.s32 256, 256
          %142 = vsyncadd %s134, %s141
          %s143 = smul.addr %s139, 128
          %s144 = scalar_lea.hbm %s0, %s143
          %s145 = sshll.u32 %s137, 4
          %s146 = int_to_ptr.vmem [resolvable:$true] %s145
          %151 = dma.hbm_to_vmem [thread:$0]  %s144, 256, %s146, %s134, 128, 128, 8
        $region20: #{tpu_custom_call.1} parent=15 // pred_fallthru
          _
        // Predicated region
        $region21: #{tpu_custom_call.1} parent=15 // pred_check
          %p152 = pneg %p79
        $region22: #{tpu_custom_call.1} parent=15 // pred_check_branch
          %154 = sbr.rel (%p152) target = $region24
        $region23: #{tpu_custom_call.1} parent=15 // pred_region
          %s155 = sand.u32 %s69, 1
          %s156 = scalar_lea.sflag [#allocation9], %s155
          %s157 = sand.u32 %s69, 1
          %s158 = smul.addr %s157, 16
          %s159 = scalar_lea.vmem [#allocation8], %s158
          %s160 = sadd.s32 %s24, %s25
          %s161 = smul.u32 2, %s160
          %s163 = ssub.s32 256, 256
          %164 = vsyncadd %s156, %s163
          %s165 = smul.addr %s161, 128
          %s166 = scalar_lea.hbm %s1, %s165
          %s167 = sshll.u32 %s159, 4
          %s168 = int_to_ptr.vmem [resolvable:$true] %s167
          %173 = dma.hbm_to_vmem [thread:$0]  %s166, 256, %s168, %s156, 128, 128, 8
        $region24: #{tpu_custom_call.1} parent=15 // pred_fallthru
          _
      $region16: #{tpu_custom_call.1} parent=5 // pred_fallthru
        _
      %p174 = scmp.le.s32.totalorder 1, %s17
      %p175 = scmp.lt.s32.totalorder %s17, 3
      %p176 = pnand %p174, %p175
      %p177 = pneg %p176
      // Predicated region
      $region25: #{tpu_custom_call.1} parent=5 // pred_check
        _
      $region26: #{tpu_custom_call.1} parent=5 // pred_check_branch
        %179 = sbr.rel (%p176) target = $region28
      $region27: #{tpu_custom_call.1} parent=5 // pred_region
        %s180 = ssub.s32 %s17, 1
        %s181 = sand.u32 %s44, 1
        %s182 = scalar_lea.sflag [#allocation6], %s181
        %s183 = sand.u32 %s44, 1
        %s184 = smul.addr %s183, 16
        %s185 = scalar_lea.vmem [#allocation5], %s184
        // Predicated region
        $region29: #{tpu_custom_call.1} parent=27 // pred_check
          %p186 = pneg %p57
        $region30: #{tpu_custom_call.1} parent=27 // pred_check_branch
          %188 = sbr.rel (%p186) target = $region32
        $region31: #{tpu_custom_call.1} parent=27 // pred_region
          %189 = dma.done %s182, 256
        $region32: #{tpu_custom_call.1} parent=27 // pred_fallthru
          _
        %s190 = sand.u32 %s72, 1
        %s191 = scalar_lea.sflag [#allocation9], %s190
        %s192 = sand.u32 %s72, 1
        %s193 = smul.addr %s192, 16
        %s194 = scalar_lea.vmem [#allocation8], %s193
        // Predicated region
        $region33: #{tpu_custom_call.1} parent=27 // pred_check
          %p195 = pneg %p85
        $region34: #{tpu_custom_call.1} parent=27 // pred_check_branch
          %197 = sbr.rel (%p195) target = $region36
        $region35: #{tpu_custom_call.1} parent=27 // pred_region
          %198 = dma.done %s191, 256
        $region36: #{tpu_custom_call.1} parent=27 // pred_fallthru
          _
        %s199 = sand.u32 %s44, 1
        %s200 = scalar_lea.sflag [#allocation6], %s199
        %s201 = sand.u32 %s44, 1
        %s202 = smul.addr %s201, 16
        %s203 = scalar_lea.vmem [#allocation5], %s202
        %p204 = pneg %p57
        %p205 = pneg %p54
        %s206 = sand.u32 %s72, 1
        %s207 = scalar_lea.sflag [#allocation9], %s206
        %s208 = sand.u32 %s72, 1
        %s209 = smul.addr %s208, 16
        %s210 = scalar_lea.vmem [#allocation8], %s209
        %p211 = pneg %p85
        %p212 = pneg %p82
        %p213 = pneg %p111
        %p214 = pneg %p108
        %s215 = sand.u32 %s98, 1
        %s216 = scalar_lea.sflag [#allocation7], %s215
        %s217 = sand.u32 %s98, 1
        %s218 = smul.addr %s217, 24
        %s219 = scalar_lea.vmem [#allocation10], %s218
        %s220 = sadd.s32 %s26, %s27
        %s221 = smul.u32 2, %s220
        %s222 = sadd.s32 %s26, %s27
        %s223 = smul.u32 2, %s222
        %p224 = scmp.eq.s32.totalorder %s27, 0
        // Predicated region
        $region37: #{tpu_custom_call.1} parent=27 // pred_check
          %p225 = pneg %p224
        $region38: #{tpu_custom_call.1} parent=27 // pred_check_branch
          %227 = sbr.rel (%p225) target = $region40
        $region39: #{tpu_custom_call.1} parent=27 // pred_region
          %228 = vst [vmem:[#allocation2] sm:$0xff] 0.0
          %229 = vst [vmem:[#allocation3] sm:$0xff] 0.0
          %230 = vst [vmem:[#allocation4] sm:$0xff] 0.0
        $region40: #{tpu_custom_call.1} parent=27 // pred_fallthru
          _
        %v231 = vld [vmem:[%s185] sm:$0xff]
        %v232 = vld [vmem:[%s185 + $0x8] sm:$0xff]
        %v233 = vld [vmem:[%s194] sm:$0xff]
        %v234 = vld [vmem:[%s194 + $0x8] sm:$0xff]
        %v235 = vand.u32 2147483647, %v231
        %v236 = vand.u32 2147483647, %v232
        %v237 = vsub.f32 0.0, %v235
        %v238 = vsub.f32 0.0, %v236
        %v239 = vmul.f32 %v237, 1.442695
        %v240 = vpow.pop %v239
        %v241 = vmul.f32 %v238, 1.442695
        %v242 = vpow.pop %v241
        %v243 = vadd.f32 %v240, 1.0
        %v244 = vadd.f32 %v242, 1.0
        %v245 = vrcp.pop %v243
        %v246 = vmul.f32 1.0, %v245
        %v247 = vrcp.pop %v244
        %v248 = vmul.f32 1.0, %v247
        %vm249 = vcmp.ge.f32.partialorder %v231, 0.0
        %vm250 = vcmp.ge.f32.partialorder %v232, 0.0
        %v251 = vmul.f32 %v240, %v246
        %v252 = vmul.f32 %v242, %v248
        %v253 = vsel %vm249, %v246, %v251
        %v254 = vsel %vm250, %v248, %v252
        %v255 = vmax.f32 %v231, 0.0
        %v256 = vmax.f32 %v232, 0.0
        %v257 = vmul.f32 %v231, %v233
        %v258 = vmul.f32 %v232, %v234
        %v259 = vsub.f32 %v255, %v257
        %v260 = vsub.f32 %v256, %v258
        %v261 = vlog2.pop %v243
        %v262 = vmul.f32 %v261, 0.6931472
        %v263 = vlog2.pop %v244
        %v264 = vmul.f32 %v263, 0.6931472
        %v265 = vadd.f32 %v259, %v262
        %v266 = vadd.f32 %v260, %v264
        %v267 = vld [vmem:[#allocation2] sm:$0xff]
        %v268 = vmul.f32 %v253, %v233
        %v269 = vmul.f32 %v254, %v234
        %v270 = vadd.f32 %v268, %v269
        %v271 = vadd.f32 %v267, %v270
        %272 = vst [vmem:[#allocation2] sm:$0xff] %v271
        %v273 = vld [vmem:[#allocation3] sm:$0xff]
        %v274 = vadd.f32 %v253, %v233
        %v275 = vadd.f32 %v254, %v234
        %v276 = vadd.f32 %v274, %v275
        %v277 = vadd.f32 %v273, %v276
        %278 = vst [vmem:[#allocation3] sm:$0xff] %v277
        %v279 = vld [vmem:[#allocation4] sm:$0xff]
        %v280 = vadd.f32 %v265, %v266
        %v281 = vadd.f32 %v279, %v280
        %282 = vst [vmem:[#allocation4] sm:$0xff] %v281
        // Predicated region
        $region41: #{tpu_custom_call.1} parent=27 // pred_check
          %p283 = pneg %p224
        $region42: #{tpu_custom_call.1} parent=27 // pred_check_branch
          %285 = sbr.rel (%p283) target = $region44
        $region43: #{tpu_custom_call.1} parent=27 // pred_region
          %v286 = vld [vmem:[#allocation2] sm:$0xff]
          %287 = vst [vmem:[%s219] sm:$0xff] %v286
          %v288 = vld [vmem:[#allocation3] sm:$0xff]
          %289 = vst [vmem:[%s219 + $0x8] sm:$0xff] %v288
          %v290 = vld [vmem:[#allocation4] sm:$0xff]
          %291 = vst [vmem:[%s219 + $0x10] sm:$0xff] %v290
        $region44: #{tpu_custom_call.1} parent=27 // pred_fallthru
          _
        %s292 = sand.u32 %s98, 1
        %s293 = scalar_lea.sflag [#allocation7], %s292
        %s294 = sand.u32 %s98, 1
        %s295 = smul.addr %s294, 24
        %s296 = scalar_lea.vmem [#allocation10], %s295
        // Predicated region
        $region45: #{tpu_custom_call.1} parent=27 // pred_check
          %p297 = pneg %p108
        $region46: #{tpu_custom_call.1} parent=27 // pred_check_branch
          %299 = sbr.rel (%p297) target = $region48
        $region47: #{tpu_custom_call.1} parent=27 // pred_region
          %s301 = ssub.s32 384, 384
          %302 = vsyncadd %s293, %s301
          %s303 = smul.addr %s26, 3
          %s304 = smul.addr %s303, 128
          %s305 = scalar_lea.hbm %s2, %s304
          %s306 = sshll.u32 %s296, 4
          %s307 = int_to_ptr.vmem [resolvable:$true] %s306
          %312 = dma.vmem_to_hbm [thread:$0]  %s307, 384, %s305, %s293, 128, 128, 8
        $region48: #{tpu_custom_call.1} parent=27 // pred_fallthru
          _
      $region28: #{tpu_custom_call.1} parent=5 // pred_fallthru
        _
      %p313 = scmp.le.s32.totalorder 2, %s17
      // Predicated region
      $region49: #{tpu_custom_call.1} parent=5 // pred_check
        %p314 = pneg %p313
      $region50: #{tpu_custom_call.1} parent=5 // pred_check_branch
        %316 = sbr.rel (%p314) target = $region52
      $region51: #{tpu_custom_call.1} parent=5 // pred_region
        %s317 = ssub.s32 %s17, 2
        // Predicated region
        $region53: #{tpu_custom_call.1} parent=51 // pred_check
          %p318 = pneg %p114
        $region54: #{tpu_custom_call.1} parent=51 // pred_check_branch
          %320 = sbr.rel (%p318) target = $region56
        $region55: #{tpu_custom_call.1} parent=51 // pred_region
          %s321 = sand.u32 %s99, 1
          %s322 = scalar_lea.sflag [#allocation7], %s321
          %s323 = sand.u32 %s99, 1
          %s324 = smul.addr %s323, 24
          %s325 = scalar_lea.vmem [#allocation10], %s324
          %326 = dma.done %s322, 384
        $region56: #{tpu_custom_call.1} parent=51 // pred_fallthru
          _
      $region52: #{tpu_custom_call.1} parent=5 // pred_fallthru
        _
    $region6: #{tpu_custom_call.1} parent=1 // loop_footer
      %s21 = sadd.s32 1, %s17
    $region7: #{tpu_custom_call.1} parent=1 // loop_footer_branch
      %16 = sbr.rel target = $region3
    $region8: #{tpu_custom_call.1} parent=1 // loop_exit
      _
    %327 = vsyncpa [#allocation6], 1
    %s328 = scalar_lea.sflag [#allocation6], 1
    %329 = vsyncpa %s328, 1
    %330 = vsyncpa [#allocation9], 1
    %s331 = scalar_lea.sflag [#allocation9], 1
    %332 = vsyncpa %s331, 1
    %333 = vsyncpa [#allocation7], 1
    %s334 = scalar_lea.sflag [#allocation7], 1
    %335 = vsyncpa %s334, 1

</llo_original>
